<compile_context>
chip_gen: v7x
topology: tpu7x:2x2x1
jax: 0.10.0
libtpu: 0.0.40
codegen_flags: <defaults>
</compile_context>

<pallas_src>
import jax
import jax.numpy as jnp
from jax import lax
from jax.experimental import pallas as pl
from jax.experimental.pallas import tpu as pltpu

EPS = 1e-5   # PyTorch BatchNorm1d default
LANE = 128   # TPU lane width


def _round_up(x, m):
    return (x + m - 1) // m * m


def prepare_linear_block_params(w, b, gamma, beta, running_mean, running_var,
                                *, eps=EPS, compute_dtype=jnp.bfloat16):
    """One-time parameter prep (do this at load time, NOT per forward call).

    w: (out_feats, in_feats) PyTorch Linear weight layout.
    Returns a dict with the pre-transposed, lane-padded bf16 weight and the
    folded f32 bias / BN scale / BN shift rows.
    """
    out_feats, in_feats = w.shape
    k_pad = _round_up(in_feats, LANE)
    n_pad = _round_up(out_feats, LANE)

    scale = gamma.astype(jnp.float32) * lax.rsqrt(
        running_var.astype(jnp.float32) + eps)
    shift = beta.astype(jnp.float32) - running_mean.astype(jnp.float32) * scale

    w_t = jnp.zeros((k_pad, n_pad), compute_dtype)
    w_t = w_t.at[:in_feats, :out_feats].set(jnp.transpose(w).astype(compute_dtype))

    def row(v):
        r = jnp.zeros((1, n_pad), jnp.float32)
        return r.at[0, :out_feats].set(v.astype(jnp.float32))

    return dict(w_t=w_t, b=row(b), scale=row(scale), shift=row(shift),
                in_feats=in_feats, out_feats=out_feats)


def _linear_block_kernel(x_ref, w_ref, b_ref, scale_ref, shift_ref,
                         o_ref, acc_ref):
    # x_ref: (tm, tk) bf16   w_ref: (tk, tn) bf16
    # b/scale/shift: (1, tn) f32   o_ref: (tm, tn) f32   acc_ref: (tm, tn) f32
    k = pl.program_id(2)

    @pl.when(k == 0)
    def _():
        acc_ref[...] = jnp.zeros_like(acc_ref)

    acc_ref[...] += jnp.dot(x_ref[...], w_ref[...],
                            preferred_element_type=jnp.float32)

    @pl.when(k == pl.num_programs(2) - 1)
    def _():
        h = jnp.maximum(acc_ref[...] + b_ref[...], 0.0)       # Linear bias + ReLU
        # Dropout: identity in eval mode. Folded BN: y = h * scale + shift.
        o_ref[...] = (h * scale_ref[...] + shift_ref[...]).astype(o_ref.dtype)


def linear_block(x, params, *, tm=256, tn=256, tk=512):
    """Fused Linear + ReLU + (eval) Dropout + BatchNorm1d.

    x: (N, in_feats) float array.
    params: output of prepare_linear_block_params().
    returns (N, out_feats) float32.
    """
    in_feats, out_feats = params["in_feats"], params["out_feats"]
    w_t, b, scale, shift = params["w_t"], params["b"], params["scale"], params["shift"]
    k_pad, n_pad = w_t.shape
    N = x.shape[0]
    assert x.shape[1] == in_feats

    # Clamp tiles to the (padded) problem size; keep (8, 128) alignment.
    tn = min(tn, n_pad)
    tk = min(tk, k_pad)
    tm = min(tm, _round_up(N, 8))
    m_pad = _round_up(N, tm)

    # Pad batch/K and cast activations to the compute dtype (bf16).
    x_p = jnp.zeros((m_pad, k_pad), w_t.dtype).at[:N, :in_feats].set(
        x.astype(w_t.dtype))

    grid = (m_pad // tm, n_pad // tn, k_pad // tk)

    cost = pl.CostEstimate(
        flops=2 * m_pad * k_pad * n_pad,
        transcendentals=0,
        bytes_accessed=(x_p.size * x_p.dtype.itemsize
                        + w_t.size * w_t.dtype.itemsize * grid[0]
                        + m_pad * n_pad * 4
                        + 3 * n_pad * 4),
    )

    # VMEM budget: double-buffered x/W/out tiles + accumulator + param rows.
    itemsize = x_p.dtype.itemsize
    vmem_bytes = (2 * (tm * tk + tk * tn) * itemsize   # x, W (double-buffered)
                  + 2 * tm * tn * 4                    # out (double-buffered)
                  + tm * tn * 4                        # f32 accumulator
                  + 2 * 3 * tn * 4)                    # bias/scale/shift rows
    vmem_limit = max(32 * 1024 * 1024, 2 * vmem_bytes)

    out_p = pl.pallas_call(
        _linear_block_kernel,
        out_shape=jax.ShapeDtypeStruct((m_pad, n_pad), jnp.float32),
        grid_spec=pltpu.PrefetchScalarGridSpec(
            num_scalar_prefetch=0,
            grid=grid,
            in_specs=[
                pl.BlockSpec((tm, tk), lambda i, j, k: (i, k)),   # x tile
                pl.BlockSpec((tk, tn), lambda i, j, k: (k, j)),   # W^T tile
                pl.BlockSpec((1, tn), lambda i, j, k: (0, j)),    # bias
                pl.BlockSpec((1, tn), lambda i, j, k: (0, j)),    # scale
                pl.BlockSpec((1, tn), lambda i, j, k: (0, j)),    # shift
            ],
            out_specs=pl.BlockSpec((tm, tn), lambda i, j, k: (i, j)),
            scratch_shapes=[pltpu.VMEM((tm, tn), jnp.float32)],
        ),
        compiler_params=pltpu.CompilerParams(
            dimension_semantics=("parallel", "parallel", "arbitrary"),
            vmem_limit_bytes=vmem_limit),
        cost_estimate=cost,
    )(x_p, w_t, b, scale, shift)

    return out_p[:N, :out_feats]


def _reference(x, w, b, gamma, beta, running_mean, running_var,
               eps=EPS, compute_dtype=jnp.bfloat16):
    # Reference with the same bf16 input quantization, f32 math.
    xc = x.astype(compute_dtype).astype(jnp.float32)
    wc = w.astype(compute_dtype).astype(jnp.float32)
    h = jnp.maximum(xc @ wc.T + b, 0.0)
    return gamma * (h - running_mean) / jnp.sqrt(running_var + eps) + beta


if __name__ == "__main__":
    key = jax.random.PRNGKey(0)
    # Small test shapes; batch deliberately NOT a multiple of the tile.
    N, in_feats, out_feats = 20, 32, 64

    k_x, k_w, k_b, k_g, k_be, k_m, k_v = jax.random.split(key, 7)
    x = jax.random.normal(k_x, (N, in_feats), dtype=jnp.float32)

    # Deterministic parameter init (mimics nn.Linear uniform init scale).
    bound = 1.0 / jnp.sqrt(jnp.float32(in_feats))
    w = jax.random.uniform(k_w, (out_feats, in_feats), jnp.float32, -bound, bound)
    b = jax.random.uniform(k_b, (out_feats,), jnp.float32, -bound, bound)

    # Non-trivial BN parameters/statistics (as if after some training).
    gamma = 1.0 + 0.1 * jax.random.normal(k_g, (out_feats,), jnp.float32)
    beta = 0.1 * jax.random.normal(k_be, (out_feats,), jnp.float32)
    running_mean = 0.05 * jax.random.normal(k_m, (out_feats,), jnp.float32)
    running_var = 1.0 + 0.1 * jnp.abs(jax.random.normal(k_v, (out_feats,), jnp.float32))

    # One-time parameter prep (outside the hot path).
    params = prepare_linear_block_params(w, b, gamma, beta,
                                         running_mean, running_var)

    out = linear_block(x, params)
    out = jax.block_until_ready(out)

    ref = _reference(x, w, b, gamma, beta, running_mean, running_var)
    assert out.shape == (N, out_feats)
    assert jnp.allclose(out, ref, atol=2e-3, rtol=2e-3), "mismatch vs reference"

    print("KERNEL_OK")
</pallas_src>

<mosaic_0001>
module attributes {stable_mosaic.version = 11 : i64} {
  func.func @_linear_block_kernel(%arg0: i32, %arg1: i32, %arg2: i32, %arg3: memref<24x128xbf16, #tpu.memory_space<vmem>>, %arg4: memref<128x128xbf16, #tpu.memory_space<vmem>>, %arg5: memref<1x128xf32, #tpu.memory_space<vmem>>, %arg6: memref<1x128xf32, #tpu.memory_space<vmem>>, %arg7: memref<1x128xf32, #tpu.memory_space<vmem>>, %arg8: memref<24x128xf32, #tpu.memory_space<vmem>>, %arg9: memref<24x128xf32, #tpu.memory_space<vmem>>) attributes {dimension_semantics = [#tpu.dimension_semantics<parallel>, #tpu.dimension_semantics<parallel>, #tpu.dimension_semantics<arbitrary>], iteration_bounds = array<i64: 1, 1, 1>, scalar_prefetch = 0 : i64, scratch_operands = 1 : i64, tpu.core_type = #tpu.core_type<tc>, window_params = [{transform_indices = @transform_0, window_bounds = array<i64: 24, 128>}, {transform_indices = @transform_1, window_bounds = array<i64: 128, 128>}, {transform_indices = @transform_2, window_bounds = array<i64: 1, 128>}, {transform_indices = @transform_3, window_bounds = array<i64: 1, 128>}, {transform_indices = @transform_4, window_bounds = array<i64: 1, 128>}, {transform_indices = @transform_5, window_bounds = array<i64: 24, 128>}]} {
    %c0_i32 = arith.constant 0 : i32
    %0 = arith.cmpi eq, %arg2, %c0_i32 : i32
    %1 = arith.extui %0 : i1 to i32
    %c0_i32_0 = arith.constant 0 : i32
    %2 = arith.cmpi ne, %1, %c0_i32_0 : i32
    scf.if %2 {
      %cst_10 = arith.constant 0.000000e+00 : f32
      %12 = vector.broadcast %cst_10 : f32 to vector<24x128xf32>
      %c0_11 = arith.constant 0 : index
      %c0_12 = arith.constant 0 : index
      %13 = vector.load %arg9[%c0_11, %c0_12] : memref<24x128xf32, #tpu.memory_space<vmem>>, vector<24x128xf32>
      tpu.vector_store %arg9[%c0_11, %c0_12], %12 {strides = array<i32>} : memref<24x128xf32, #tpu.memory_space<vmem>>, vector<24x128xf32>,
    } else {
    }
    %c0 = arith.constant 0 : index
    %c0_1 = arith.constant 0 : index
    %3 = vector.load %arg9[%c0, %c0_1] : memref<24x128xf32, #tpu.memory_space<vmem>>, vector<24x128xf32>
    %c0_2 = arith.constant 0 : index
    %c0_3 = arith.constant 0 : index
    %4 = vector.load %arg3[%c0_2, %c0_3] : memref<24x128xbf16, #tpu.memory_space<vmem>>, vector<24x128xbf16>
    %c0_4 = arith.constant 0 : index
    %c0_5 = arith.constant 0 : index
    %5 = vector.load %arg4[%c0_4, %c0_5] : memref<128x128xbf16, #tpu.memory_space<vmem>>, vector<128x128xbf16>
    %cst = arith.constant dense<0.000000e+00> : vector<24x128xf32>
    %6 = tpu.matmul %4, %5, %cst {dimension_numbers = #tpu.dot_dimension_numbers<[1], [0], [0], [1], [0, 0, 1, 1], [], []>} : vector<24x128xbf16>, vector<128x128xbf16>, vector<24x128xf32> -> vector<24x128xf32>
    %7 = arith.addf %3, %6 : vector<24x128xf32>
    %c0_6 = arith.constant 0 : index
    %c0_7 = arith.constant 0 : index
    %8 = vector.load %arg9[%c0_6, %c0_7] : memref<24x128xf32, #tpu.memory_space<vmem>>, vector<24x128xf32>
    tpu.vector_store %arg9[%c0_6, %c0_7], %7 {strides = array<i32>} : memref<24x128xf32, #tpu.memory_space<vmem>>, vector<24x128xf32>,
    %c0_i32_8 = arith.constant 0 : i32
    %9 = arith.cmpi eq, %arg2, %c0_i32_8 : i32
    %10 = arith.extui %9 : i1 to i32
    %c0_i32_9 = arith.constant 0 : i32
    %11 = arith.cmpi ne, %10, %c0_i32_9 : i32
    scf.if %11 {
      %c0_10 = arith.constant 0 : index
      %c0_11 = arith.constant 0 : index
      %12 = vector.load %arg9[%c0_10, %c0_11] : memref<24x128xf32, #tpu.memory_space<vmem>>, vector<24x128xf32>
      %c0_12 = arith.constant 0 : index
      %c0_13 = arith.constant 0 : index
      %13 = vector.load %arg5[%c0_12, %c0_13] : memref<1x128xf32, #tpu.memory_space<vmem>>, vector<1x128xf32>
      %14 = vector.broadcast %13 : vector<1x128xf32> to vector<24x128xf32>
      %15 = arith.addf %12, %14 : vector<24x128xf32>
      %cst_14 = arith.constant 0.000000e+00 : f32
      %16 = vector.broadcast %cst_14 : f32 to vector<24x128xf32>
      %17 = arith.maximumf %15, %16 : vector<24x128xf32>
      %c0_15 = arith.constant 0 : index
      %c0_16 = arith.constant 0 : index
      %18 = vector.load %arg6[%c0_15, %c0_16] : memref<1x128xf32, #tpu.memory_space<vmem>>, vector<1x128xf32>
      %19 = vector.broadcast %18 : vector<1x128xf32> to vector<24x128xf32>
      %20 = arith.mulf %17, %19 : vector<24x128xf32>
      %c0_17 = arith.constant 0 : index
      %c0_18 = arith.constant 0 : index
      %21 = vector.load %arg7[%c0_17, %c0_18] : memref<1x128xf32, #tpu.memory_space<vmem>>, vector<1x128xf32>
      %22 = vector.broadcast %21 : vector<1x128xf32> to vector<24x128xf32>
      %23 = arith.addf %20, %22 : vector<24x128xf32>
      %c0_19 = arith.constant 0 : index
      %c0_20 = arith.constant 0 : index
      %24 = vector.load %arg8[%c0_19, %c0_20] : memref<24x128xf32, #tpu.memory_space<vmem>>, vector<24x128xf32>
      tpu.vector_store %arg8[%c0_19, %c0_20], %23 {strides = array<i32>} : memref<24x128xf32, #tpu.memory_space<vmem>>, vector<24x128xf32>,
    } else {
    }
    return
  }
  func.func @transform_0(%arg0: i32, %arg1: i32, %arg2: i32) -> (i32, i32) {
    %c0_i32 = arith.constant 0 : i32
    return %arg0, %arg2 : i32, i32
  }
  func.func @transform_1(%arg0: i32, %arg1: i32, %arg2: i32) -> (i32, i32) {
    %c0_i32 = arith.constant 0 : i32
    return %arg2, %arg1 : i32, i32
  }
  func.func @transform_2(%arg0: i32, %arg1: i32, %arg2: i32) -> (i32, i32) {
    %c0_i32 = arith.constant 0 : i32
    %c0_i32_0 = arith.constant 0 : i32
    return %c0_i32, %arg1 : i32, i32
  }
  func.func @transform_3(%arg0: i32, %arg1: i32, %arg2: i32) -> (i32, i32) {
    %c0_i32 = arith.constant 0 : i32
    %c0_i32_0 = arith.constant 0 : i32
    return %c0_i32, %arg1 : i32, i32
  }
  func.func @transform_4(%arg0: i32, %arg1: i32, %arg2: i32) -> (i32, i32) {
    %c0_i32 = arith.constant 0 : i32
    %c0_i32_0 = arith.constant 0 : i32
    return %c0_i32, %arg1 : i32, i32
  }
  func.func @transform_5(%arg0: i32, %arg1: i32, %arg2: i32) -> (i32, i32) {
    %c0_i32 = arith.constant 0 : i32
    return %arg0, %arg1 : i32, i32
  }
}

</mosaic_0001>

<llo_original>
// kernel: tpu_custom_call.1
$region0: #{tpu_custom_call.1}
  #allocation0 [shape = 'u32[]', space=smem, size = 0x4, offset = 0x4, fixed_abs, tag = 'smem constant byte address 0x4 - core index']
  #allocation1 [shape = 'u32[144,128]{1,0:T(1,128)}', space=vmem, size = 0x12000, scoped, tag = 'internal scratch']
  #allocation2 [shape = 'f32[24,128]{1,0:T(8,128)}', space=vmem, size = 0x3000, scoped, tag = 'scratch operand']
  %s0 = inlined_call_operand.hbm [shape: bf16[24,128], index: 0, kind: input, shape index: {}]
  %s1 = inlined_call_operand.hbm [shape: bf16[128,128], index: 1, kind: input, shape index: {}]
  %s2 = inlined_call_operand.vmem [shape: f32[1,128], index: 2, kind: input, shape index: {}]
  %s3 = inlined_call_operand.vmem [shape: f32[1,128], index: 3, kind: input, shape index: {}]
  %s4 = inlined_call_operand.vmem [shape: f32[1,128], index: 4, kind: input, shape index: {}]
  %s5 = inlined_call_operand.hbm [shape: f32[24,128], index: 5, kind: output, shape index: {}]
  %s6 = sld [smem:[#allocation0]]
  $region46: #{tpu_custom_call.1} parent=0
    _
  %s8 = ssub.s32 1, %s6
  %s9 = scalar_select 0, %s8, %s6
  $region1: #{tpu_custom_call.1} parent=0
    #allocation3 [shape = 'u8[6144]{0}', space=vmem, size = 0x1800, scoped, tag = 'input window, operand 0, single buffered']
    #allocation4 [shape = 's32[1]{0}', space=sflag, size = 0x4, scoped, tag = 'scoped memory for tpu_custom_call.1']
    #allocation5 [shape = 's32[1]{0}', space=sflag, size = 0x4, scoped, tag = 'scoped memory for tpu_custom_call.1']
    #allocation6 [shape = 'u8[32768]{0}', space=vmem, size = 0x8000, scoped, tag = 'input window, operand 1, single buffered']
    #allocation7 [shape = 's32[1]{0}', space=sflag, size = 0x4, scoped, tag = 'scoped memory for tpu_custom_call.1']
    #allocation8 [shape = 'u8[12288]{0}', space=vmem, size = 0x3000, scoped, tag = 'output window, operand 0, single buffered']
    %10 = vsyncpa [#allocation4], 0
    %11 = vsyncpa [#allocation7], 0
    %12 = vsyncpa [#allocation5], 0
    // Predicated region
    $region2: #{tpu_custom_call.1} parent=1 // pred_check
      _
    $region3: #{tpu_custom_call.1} parent=1 // pred_check_branch
      %14 = sbr.rel (0) target = $region5
    $region4: #{tpu_custom_call.1} parent=1 // pred_region
      %s16 = ssub.s32 192, 192
      %17 = vsyncadd [#allocation4], %s16
      %s18 = sshll.u32 [#allocation3], 4
      %s19 = int_to_ptr.vmem [resolvable:$true] %s18
      %24 = dma.hbm_to_vmem [thread:$0]  %s0, 192, %s19, [#allocation4], 64, 64, 4
    $region5: #{tpu_custom_call.1} parent=1 // pred_fallthru
      _
    // Predicated region
    $region6: #{tpu_custom_call.1} parent=1 // pred_check
      _
    $region7: #{tpu_custom_call.1} parent=1 // pred_check_branch
      %26 = sbr.rel (0) target = $region9
    $region8: #{tpu_custom_call.1} parent=1 // pred_region
      %s28 = ssub.s32 1024, 1024
      %29 = vsyncadd [#allocation7], %s28
      %s30 = sshll.u32 [#allocation6], 4
      %s31 = int_to_ptr.vmem [resolvable:$true] %s30
      %36 = dma.hbm_to_vmem [thread:$0]  %s1, 1024, %s31, [#allocation7], 64, 64, 4
    $region9: #{tpu_custom_call.1} parent=1 // pred_fallthru
      _
    // Predicated region
    $region10: #{tpu_custom_call.1} parent=1 // pred_check
      _
    $region11: #{tpu_custom_call.1} parent=1 // pred_check_branch
      %38 = sbr.rel (0) target = $region13
    $region12: #{tpu_custom_call.1} parent=1 // pred_region
      _
    $region13: #{tpu_custom_call.1} parent=1 // pred_fallthru
      _
    // Predicated region
    $region14: #{tpu_custom_call.1} parent=1 // pred_check
      _
    $region15: #{tpu_custom_call.1} parent=1 // pred_check_branch
      %40 = sbr.rel (0) target = $region17
    $region16: #{tpu_custom_call.1} parent=1 // pred_region
      _
    $region17: #{tpu_custom_call.1} parent=1 // pred_fallthru
      _
    // Predicated region
    $region18: #{tpu_custom_call.1} parent=1 // pred_check
      _
    $region19: #{tpu_custom_call.1} parent=1 // pred_check_branch
      %42 = sbr.rel (0) target = $region21
    $region20: #{tpu_custom_call.1} parent=1 // pred_region
      _
    $region21: #{tpu_custom_call.1} parent=1 // pred_fallthru
      _
    // Predicated region
    $region22: #{tpu_custom_call.1} parent=1 // pred_check
      _
    $region23: #{tpu_custom_call.1} parent=1 // pred_check_branch
      %44 = sbr.rel (0) target = $region25
    $region24: #{tpu_custom_call.1} parent=1 // pred_region
      %45 = dma.done [#allocation4], 192
    $region25: #{tpu_custom_call.1} parent=1 // pred_fallthru
      _
    // Predicated region
    $region26: #{tpu_custom_call.1} parent=1 // pred_check
      _
    $region27: #{tpu_custom_call.1} parent=1 // pred_check_branch
      %47 = sbr.rel (0) target = $region29
    $region28: #{tpu_custom_call.1} parent=1 // pred_region
      %48 = dma.done [#allocation7], 1024
    $region29: #{tpu_custom_call.1} parent=1 // pred_fallthru
      _
    %p50 = scmp.eq.s32.totalorder 0, 0
    // Predicated region
    $region30: #{tpu_custom_call.1} parent=1 // pred_check
      %p51 = pneg %p50
    $region31: #{tpu_custom_call.1} parent=1 // pred_check_branch
      %53 = sbr.rel (%p51) target = $region33
    $region32: #{tpu_custom_call.1} parent=1 // pred_region
      %54 = vst [vmem:[#allocation2] sm:$0xff] 0.0
      %55 = vst [vmem:[#allocation2 + $0x8] sm:$0xff] 0.0
      %56 = vst [vmem:[#allocation2 + $0x10] sm:$0xff] 0.0
    $region33: #{tpu_custom_call.1} parent=1 // pred_fallthru
      _
    %v57 = vld [vmem:[#allocation2] sm:$0xff]
    %v58 = vld [vmem:[#allocation2 + $0x8] sm:$0xff]
    %v59 = vld [vmem:[#allocation2 + $0x10] sm:$0xff]
    %v60 = vld [vmem:[#allocation3] sm:$0xf]
    %v61 = vld [vmem:[#allocation3 + $0x4] sm:$0xf]
    %v62 = vld [vmem:[#allocation3 + $0x8] sm:$0xf]
    %v63 = vld [vmem:[#allocation6] sm:$0xf]
    %v64 = vld [vmem:[#allocation6 + $0x4] sm:$0xf]
    %v65 = vld [vmem:[#allocation6 + $0x8] sm:$0xf]
    %v66 = vld [vmem:[#allocation6 + $0xc] sm:$0xf]
    %v67 = vld [vmem:[#allocation6 + $0x10] sm:$0xf]
    %v68 = vld [vmem:[#allocation6 + $0x14] sm:$0xf]
    %v69 = vld [vmem:[#allocation6 + $0x18] sm:$0xf]
    %v70 = vld [vmem:[#allocation6 + $0x1c] sm:$0xf]
    %v71 = vld [vmem:[#allocation6 + $0x20] sm:$0xf]
    %v72 = vld [vmem:[#allocation6 + $0x24] sm:$0xf]
    %v73 = vld [vmem:[#allocation6 + $0x28] sm:$0xf]
    %v74 = vld [vmem:[#allocation6 + $0x2c] sm:$0xf]
    %v75 = vld [vmem:[#allocation6 + $0x30] sm:$0xf]
    %v76 = vld [vmem:[#allocation6 + $0x34] sm:$0xf]
    %v77 = vld [vmem:[#allocation6 + $0x38] sm:$0xf]
    %v78 = vld [vmem:[#allocation6 + $0x3c] sm:$0xf]
    %v82 = vunpack.c.l.b16 %v60
    %v83 = vunpack.c.l.b16 %v61
    %v84 = vunpack.c.l.b16 %v62
    %v85 = vpack.c.b16 %v83, %v82
    %v86 = vpack.c.b16 %v84, %v84
    %v105 = vunpack.c.l.b16 %v63
    %v106 = vunpack.c.l.b16 %v64
    %v107 = vunpack.c.l.b16 %v65
    %v108 = vunpack.c.l.b16 %v66
    %v109 = vunpack.c.l.b16 %v67
    %v110 = vunpack.c.l.b16 %v68
    %v111 = vunpack.c.l.b16 %v69
    %v112 = vunpack.c.l.b16 %v70
    %v113 = vunpack.c.l.b16 %v71
    %v114 = vunpack.c.l.b16 %v72
    %v115 = vunpack.c.l.b16 %v73
    %v116 = vunpack.c.l.b16 %v74
    %v117 = vunpack.c.l.b16 %v75
    %v118 = vunpack.c.l.b16 %v76
    %v119 = vunpack.c.l.b16 %v77
    %v120 = vunpack.c.l.b16 %v78
    %v121 = vpack.c.b16 %v106, %v105
    %v122 = vpack.c.b16 %v108, %v107
    %v123 = vpack.c.b16 %v110, %v109
    %v124 = vpack.c.b16 %v112, %v111
    %v125 = vpack.c.b16 %v114, %v113
    %v126 = vpack.c.b16 %v116, %v115
    %v127 = vpack.c.b16 %v118, %v117
    %v128 = vpack.c.b16 %v120, %v119
    %137 = vmatprep.subr.bf16.mxu0 0
    %138 = vmatpush1.bf16.msra.mxu0 %v121
    %139 = vmatprep.subr.bf16.mxu0 0
    %140 = vmatpush1.bf16.msra.mxu0 %v122
    %141 = vmatprep.subr.bf16.mxu0 0
    %142 = vmatpush1.bf16.msra.mxu0 %v123
    %143 = vmatprep.subr.bf16.mxu0 0
    %144 = vmatpush1.bf16.msra.mxu0 %v124
    %145 = vmatprep.subr.bf16.mxu0 0
    %146 = vmatpush1.bf16.msra.mxu0 %v125
    %147 = vmatprep.subr.bf16.mxu0 0
    %148 = vmatpush1.bf16.msra.mxu0 %v126
    %149 = vmatprep.subr.bf16.mxu0 0
    %150 = vmatpush1.bf16.msra.mxu0 %v127
    %151 = vmatprep.subr.bf16.mxu0 0
    %152 = vmatpush1.bf16.msra.mxu0 %v128
    %153 = vmatprep.subr.bf16.mxu0 0
    %154 = vmatpush1.bf16.msra.mxu0 0
    %155 = vmatprep.subr.bf16.mxu0 0
    %156 = vmatpush1.bf16.msra.mxu0 0
    %157 = vmatprep.subr.bf16.mxu0 0
    %158 = vmatpush1.bf16.msra.mxu0 0
    %159 = vmatprep.subr.bf16.mxu0 0
    %160 = vmatpush1.bf16.msra.mxu0 0
    %161 = vmatprep.subr.bf16.mxu0 0
    %162 = vmatpush1.bf16.msra.mxu0 0
    %163 = vmatprep.subr.bf16.mxu0 0
    %164 = vmatpush1.bf16.msra.mxu0 0
    %165 = vmatprep.subr.bf16.mxu0 0
    %166 = vmatpush1.bf16.msra.mxu0 0
    %167 = vmatprep.subr.bf16.mxu0 0
    %168 = vmatpush1.bf16.msra.mxu0 0
    %169 = vmatprep.mubr.bf16.mxu0 0
    %170 = vmatmul.mubr.bf16.gmra.mrb[0].mxu0 %v85
    %v171 = vpop.f32.mrb[0].mxu0
    %v172 = vadd.f32 0.0, %v171
    %v173 = vpop.f32.mrb[0].mxu0
    %v174 = vpop.f32.mrb[0].mxu0
    %v175 = vadd.f32 0.0, %v174
    %v176 = vpop.f32.mrb[0].mxu0
    %177 = vmatprep.mubr.bf16.mxu0 0
    %178 = vmatmul.mubr.bf16.gmra.mrb[0].mxu0 %v86
    %v179 = vpop.f32.mrb[0].mxu0
    %v180 = vadd.f32 0.0, %v179
    %v181 = vpop.f32.mrb[0].mxu0
    %v182 = vpop.f32.mrb[0].mxu0
    %v183 = vpop.f32.mrb[0].mxu0
    %184 = vdwg.mxu0
    %v185 = vadd.f32 %v57, %v172
    %v186 = vadd.f32 %v58, %v175
    %v187 = vadd.f32 %v59, %v180
    %188 = vst [vmem:[#allocation2] sm:$0xff] %v185
    %189 = vst [vmem:[#allocation2 + $0x8] sm:$0xff] %v186
    %190 = vst [vmem:[#allocation2 + $0x10] sm:$0xff] %v187
    // Predicated region
    $region34: #{tpu_custom_call.1} parent=1 // pred_check
      %p191 = pneg %p50
    $region35: #{tpu_custom_call.1} parent=1 // pred_check_branch
      %193 = sbr.rel (%p191) target = $region37
    $region36: #{tpu_custom_call.1} parent=1 // pred_region
      %v194 = vld [vmem:[#allocation2] sm:$0xff]
      %v195 = vld [vmem:[#allocation2 + $0x8] sm:$0xff]
      %v196 = vld [vmem:[#allocation2 + $0x10] sm:$0xff]
      %v197 = vld [vmem:[%s2] sm:$0x1]
      %v199 = vlaneseq
      %v200 = vshrl.u32 %v199, 7
      %v201 = vsub.s32 0, %v200
      %v202 = vrot.slane %v197, %v201
      %v204 = vadd.f32 %v194, %v202
      %v205 = vadd.f32 %v195, %v202
      %v206 = vadd.f32 %v196, %v202
      %v207 = vmax.f32 %v204, 0.0
      %v208 = vmax.f32 %v205, 0.0
      %v209 = vmax.f32 %v206, 0.0
      %v210 = vld [vmem:[%s3] sm:$0x1]
      %v212 = vlaneseq
      %v213 = vshrl.u32 %v212, 7
      %v214 = vsub.s32 0, %v213
      %v215 = vrot.slane %v210, %v214
      %v217 = vmul.f32 %v207, %v215
      %v218 = vmul.f32 %v208, %v215
      %v219 = vmul.f32 %v209, %v215
      %v220 = vld [vmem:[%s4] sm:$0x1]
      %v222 = vlaneseq
      %v223 = vshrl.u32 %v222, 7
      %v224 = vsub.s32 0, %v223
      %v225 = vrot.slane %v220, %v224
      %v227 = vadd.f32 %v217, %v225
      %v228 = vadd.f32 %v218, %v225
      %v229 = vadd.f32 %v219, %v225
      %230 = vst [vmem:[#allocation8] sm:$0xff] %v227
      %231 = vst [vmem:[#allocation8 + $0x8] sm:$0xff] %v228
      %232 = vst [vmem:[#allocation8 + $0x10] sm:$0xff] %v229
    $region37: #{tpu_custom_call.1} parent=1 // pred_fallthru
      _
    // Predicated region
    $region38: #{tpu_custom_call.1} parent=1 // pred_check
      _
    $region39: #{tpu_custom_call.1} parent=1 // pred_check_branch
      %234 = sbr.rel (0) target = $region41
    $region40: #{tpu_custom_call.1} parent=1 // pred_region
      %s236 = ssub.s32 384, 384
      %237 = vsyncadd [#allocation5], %s236
      %s238 = sshll.u32 [#allocation8], 4
      %s239 = int_to_ptr.vmem [resolvable:$true] %s238
      %244 = dma.vmem_to_hbm [thread:$0]  %s239, 384, %s5, [#allocation5], 128, 128, 8
    $region41: #{tpu_custom_call.1} parent=1 // pred_fallthru
      _
    // Predicated region
    $region42: #{tpu_custom_call.1} parent=1 // pred_check
      _
    $region43: #{tpu_custom_call.1} parent=1 // pred_check_branch
      %246 = sbr.rel (0) target = $region45
    $region44: #{tpu_custom_call.1} parent=1 // pred_region
      %247 = dma.done [#allocation5], 384
    $region45: #{tpu_custom_call.1} parent=1 // pred_fallthru
      _
    %248 = vsyncpa [#allocation4], 1
    %249 = vsyncpa [#allocation7], 1
    %250 = vsyncpa [#allocation5], 1

</llo_original>
